<compile_context>
chip_gen: v5e
topology: v5e:2x2
jax: 0.10.0
libtpu: 0.0.40
codegen_flags: <defaults>
</compile_context>

<pallas_src>
import jax
import jax.numpy as jnp
from jax import lax
from jax.experimental import pallas as pl
from jax.experimental.pallas import tpu as pltpu


_PAD = 1  # nn.Conv2d(..., padding=1) in the reference module.


def _fold_upsample_into_weights(weight, s):
    """Sub-pixel trick: nearest-upsample(s) + conv3x3(pad=1) == conv3x3(pad=1) on the
    ORIGINAL image with s*s phase-collapsed weight copies, followed by a pixel-shuffle.
    Returns (s*s*Cout, Cin, 3, 3) effective weights, rows ordered (pi, pj, cout)."""
    Cout, Cin, KH, KW = weight.shape
    w_eff = jnp.zeros((s, s, Cout, Cin, KH, KW), jnp.float32)
    for pi in range(s):
        for kh in range(KH):
            a = (pi + kh - _PAD) // s          # original-row offset, in {-1, 0, 1}
            for pj in range(s):
                for kw in range(KW):
                    b = (pj + kw - _PAD) // s  # original-col offset, in {-1, 0, 1}
                    w_eff = w_eff.at[pi, pj, :, :, a + _PAD, b + _PAD].add(
                        weight[:, :, kh, kw].astype(jnp.float32))
    return w_eff.reshape(s * s * Cout, Cin, KH, KW)


def _make_kernel(KH, KW, Cin, h, w, Wp, Lout, Lpad):
    """Build the conv kernel with static tap geometry baked in (original resolution)."""
    pad = _PAD
    K = KH * KW * Cin

    def kernel(x_ref, w_ref, b_ref, o_ref, xp_ref, p_ref):
        # x_ref : (1, Cin, h*w)      raw ORIGINAL image, rows flattened (f32)
        # w_ref : (Cout2, K)         bf16 phase-folded weights, (kh, kw, cin) columns
        # b_ref : (Cout2, 1)         f32 bias replicated per phase
        # o_ref : (1, Cout2, Lpad)   Lpad = round_up(h*Wp, 128) -> unmasked lane-dense vst
        # xp_ref: (Cin, Lin)         bf16 scratch: zero-padded image, flat row stride Wp
        # p_ref : (K, Lpad)          bf16 scratch: im2col patch matrix

        # In-kernel zero-pad (pad=1 ring + one spare bottom row for the flat-tap trick).
        xp_ref[...] = jnp.zeros_like(xp_ref)
        for i in range(h):
            off = (i + pad) * Wp + pad
            xp_ref[:, off:off + w] = x_ref[0, :, i * w:(i + 1) * w].astype(xp_ref.dtype)

        # im2col in the flattened padded domain: tap (kh, kw) is ONE contiguous slice.
        # NOTE: the Wp-w "junk" columns of each flat row alias the next image row; they
        # are only safe because they are cropped after the kernel - never consume them.
        if Lpad > Lout:
            p_ref[:, Lout:] = jnp.zeros((K, Lpad - Lout), p_ref.dtype)
        for kh in range(KH):
            for kw in range(KW):
                t = kh * KW + kw
                d = kh * Wp + kw                     # static lane offset of this tap
                p_ref[t * Cin:(t + 1) * Cin, :Lout] = xp_ref[:, d:d + Lout]

        # Single MXU contraction: bf16 operands, f32 accumulate.
        acc = jnp.dot(w_ref[...], p_ref[...], preferred_element_type=jnp.float32)
        o_ref[0] = (acc + b_ref[...]).astype(o_ref.dtype)

    return kernel


def resize_conv2d(x, weight, bias, scale_factor):
    """F.interpolate(x, scale_factor, mode='nearest') -> Conv2d(3x3, stride=1, padding=1).

    x: (N, Cin, h, w) NCHW.  weight: (Cout, Cin, 3, 3).  bias: (Cout,).
    Returns (N, Cout, h*s, w*s) NCHW.
    """
    N, Cin, h, w = x.shape
    Cout, Cin_w, KH, KW = weight.shape
    assert Cin_w == Cin
    s = int(scale_factor)
    assert s == scale_factor and s >= 1, "nearest upsample needs a positive integer scale"
    assert KH == 3 and KW == 3, "phase folding derived for kernel_size=3, padding=1"
    # TODO(synk): generalize the weight folding to other kernel_size / padding combos.

    Cout2 = s * s * Cout
    K = KH * KW * Cin
    Wp = w + 2 * _PAD                          # flat row stride of the padded ORIGINAL image
    Lout = h * Wp                              # flattened output length (incl. junk cols)
    Lpad = ((Lout + 127) // 128) * 128         # lane-dense matmul / store width
    Lin = (h + 2 * _PAD + (1 if KW > 1 else 0)) * Wp
    assert (KH - 1) * Wp + (KW - 1) + Lout <= Lin   # largest tap slice stays in-bounds

    # Trace-time weight prep (tiny): fold the upsample into the weights, flatten, cast bf16.
    w_eff = _fold_upsample_into_weights(weight, s)                         # (Cout2, Cin, 3, 3)
    w_flat = jnp.transpose(w_eff, (0, 2, 3, 1)).reshape(Cout2, K).astype(jnp.bfloat16)
    b2 = jnp.reshape(jnp.broadcast_to(bias.astype(jnp.float32), (s * s, Cout)), (Cout2, 1))

    x_rows = x.reshape(N, Cin, h * w)          # free row-major metadata reshape, no copy

    kernel = _make_kernel(KH, KW, Cin, h, w, Wp, Lout, Lpad)

    out_flat = pl.pallas_call(
        kernel,
        out_shape=jax.ShapeDtypeStruct((N, Cout2, Lpad), x.dtype),
        grid_spec=pltpu.PrefetchScalarGridSpec(
            num_scalar_prefetch=0,
            grid=(N,),
            in_specs=[
                pl.BlockSpec((1, Cin, h * w), lambda n: (n, 0, 0)),
                pl.BlockSpec((Cout2, K), lambda n: (0, 0)),
                pl.BlockSpec((Cout2, 1), lambda n: (0, 0)),
            ],
            out_specs=pl.BlockSpec((1, Cout2, Lpad), lambda n: (n, 0, 0)),
            scratch_shapes=[
                pltpu.VMEM((Cin, Lin), jnp.bfloat16),
                pltpu.VMEM((K, Lpad), jnp.bfloat16),
            ],
        ),
        compiler_params=pltpu.CompilerParams(
            dimension_semantics=("parallel",),
        ),
    )(x_rows, w_flat, b2)

    # Pixel-shuffle the s*s phase blocks back into spatial and drop the junk columns.
    out = out_flat[:, :, :Lout].reshape(N, s, s, Cout, h, Wp)[:, :, :, :, :, :w]
    out = jnp.transpose(out, (0, 3, 4, 1, 5, 2)).reshape(N, Cout, h * s, w * s)
    return out


def _reference(x, weight, bias, scale_factor):
    """Pure-JAX reference (upsample + lax.conv) for correctness check."""
    x_up = jnp.repeat(jnp.repeat(x, scale_factor, axis=2), scale_factor, axis=3)
    out = lax.conv_general_dilated(
        x_up, weight,
        window_strides=(1, 1),
        padding=((1, 1), (1, 1)),
        dimension_numbers=("NCHW", "OIHW", "NCHW"),
    )
    return out + bias[None, :, None, None]


if __name__ == "__main__":
    # ResizeConv2d(in_channels=4, out_channels=8, kernel_size=3, scale_factor=2)
    in_channels, out_channels, kernel_size, scale_factor = 4, 8, 3, 2
    N, h, w = 2, 8, 8  # pre-upsample spatial; output will be (2, 8, 16, 16)

    key = jax.random.PRNGKey(0)
    kx, kw_, kb = jax.random.split(key, 3)

    x = jax.random.normal(kx, (N, in_channels, h, w), dtype=jnp.float32)

    # Deterministic synthetic conv params (PyTorch-style uniform bound 1/sqrt(fan_in)).
    fan_in = in_channels * kernel_size * kernel_size
    bound = 1.0 / (fan_in ** 0.5)
    weight = jax.random.uniform(
        kw_, (out_channels, in_channels, kernel_size, kernel_size),
        minval=-bound, maxval=bound, dtype=jnp.float32)
    bias = jax.random.uniform(
        kb, (out_channels,), minval=-bound, maxval=bound, dtype=jnp.float32)

    out = jax.block_until_ready(resize_conv2d(x, weight, bias, scale_factor))
    ref = jax.block_until_ready(_reference(x, weight, bias, scale_factor))

    assert out.shape == (N, out_channels, h * scale_factor, w * scale_factor), out.shape
    max_err = float(jnp.max(jnp.abs(out - ref)))
    assert jnp.allclose(out, ref, atol=3e-2, rtol=3e-2), (
        f"mismatch vs reference conv (max abs err {max_err})")

    print("KERNEL_OK")
</pallas_src>

<mosaic_0001>
module attributes {stable_mosaic.version = 11 : i64} {
  func.func @kernel(%arg0: i32, %arg1: memref<1x4x64xf32, #tpu.memory_space<vmem>>, %arg2: memref<32x36xbf16, #tpu.memory_space<vmem>>, %arg3: memref<32x1xf32, #tpu.memory_space<vmem>>, %arg4: memref<1x32x128xf32, #tpu.memory_space<vmem>>, %arg5: memref<4x110xbf16, #tpu.memory_space<vmem>>, %arg6: memref<36x128xbf16, #tpu.memory_space<vmem>>) attributes {dimension_semantics = [#tpu.dimension_semantics<parallel>], iteration_bounds = array<i64: 2>, scalar_prefetch = 0 : i64, scratch_operands = 2 : i64, tpu.core_type = #tpu.core_type<tc>, window_params = [{transform_indices = @transform_0, window_bounds = array<i64: 1, 4, 64>}, {pipeline_mode = #tpu.pipeline_mode<synchronous>, transform_indices = @transform_1, window_bounds = array<i64: 32, 36>}, {pipeline_mode = #tpu.pipeline_mode<synchronous>, transform_indices = @transform_2, window_bounds = array<i64: 32, 1>}, {transform_indices = @transform_3, window_bounds = array<i64: 1, 32, 128>}]} {
    %cst = arith.constant 0.000000e+00 : bf16
    %0 = vector.broadcast %cst : bf16 to vector<4x110xbf16>
    %c0 = arith.constant 0 : index
    %c0_0 = arith.constant 0 : index
    %1 = vector.load %arg5[%c0, %c0_0] : memref<4x110xbf16, #tpu.memory_space<vmem>>, vector<4x110xbf16>
    tpu.vector_store %arg5[%c0, %c0_0], %0 {strides = array<i32>} : memref<4x110xbf16, #tpu.memory_space<vmem>>, vector<4x110xbf16>,
    %c0_1 = arith.constant 0 : index
    %c0_2 = arith.constant 0 : index
    %c0_3 = arith.constant 0 : index
    %2 = vector.load %arg1[%c0_1, %c0_2, %c0_3] : memref<1x4x64xf32, #tpu.memory_space<vmem>>, vector<1x4x8xf32>
    %3 = vector.shape_cast %2 : vector<1x4x8xf32> to vector<4x8xf32>
    %4 = arith.truncf %3 : vector<4x8xf32> to vector<4x8xbf16>
    %c0_4 = arith.constant 0 : index
    %c11 = arith.constant 11 : index
    %5 = vector.load %arg5[%c0_4, %c11] : memref<4x110xbf16, #tpu.memory_space<vmem>>, vector<4x8xbf16>
    tpu.vector_store %arg5[%c0_4, %c11], %4 {strides = array<i32>} : memref<4x110xbf16, #tpu.memory_space<vmem>>, vector<4x8xbf16>,
    %c0_5 = arith.constant 0 : index
    %c0_6 = arith.constant 0 : index
    %c8 = arith.constant 8 : index
    %6 = vector.load %arg1[%c0_5, %c0_6, %c8] : memref<1x4x64xf32, #tpu.memory_space<vmem>>, vector<1x4x8xf32>
    %7 = vector.shape_cast %6 : vector<1x4x8xf32> to vector<4x8xf32>
    %8 = arith.truncf %7 : vector<4x8xf32> to vector<4x8xbf16>
    %c0_7 = arith.constant 0 : index
    %c21 = arith.constant 21 : index
    %9 = vector.load %arg5[%c0_7, %c21] : memref<4x110xbf16, #tpu.memory_space<vmem>>, vector<4x8xbf16>
    tpu.vector_store %arg5[%c0_7, %c21], %8 {strides = array<i32>} : memref<4x110xbf16, #tpu.memory_space<vmem>>, vector<4x8xbf16>,
    %c0_8 = arith.constant 0 : index
    %c0_9 = arith.constant 0 : index
    %c16 = arith.constant 16 : index
    %10 = vector.load %arg1[%c0_8, %c0_9, %c16] : memref<1x4x64xf32, #tpu.memory_space<vmem>>, vector<1x4x8xf32>
    %11 = vector.shape_cast %10 : vector<1x4x8xf32> to vector<4x8xf32>
    %12 = arith.truncf %11 : vector<4x8xf32> to vector<4x8xbf16>
    %c0_10 = arith.constant 0 : index
    %c31 = arith.constant 31 : index
    %13 = vector.load %arg5[%c0_10, %c31] : memref<4x110xbf16, #tpu.memory_space<vmem>>, vector<4x8xbf16>
    tpu.vector_store %arg5[%c0_10, %c31], %12 {strides = array<i32>} : memref<4x110xbf16, #tpu.memory_space<vmem>>, vector<4x8xbf16>,
    %c0_11 = arith.constant 0 : index
    %c0_12 = arith.constant 0 : index
    %c24 = arith.constant 24 : index
    %14 = vector.load %arg1[%c0_11, %c0_12, %c24] : memref<1x4x64xf32, #tpu.memory_space<vmem>>, vector<1x4x8xf32>
    %15 = vector.shape_cast %14 : vector<1x4x8xf32> to vector<4x8xf32>
    %16 = arith.truncf %15 : vector<4x8xf32> to vector<4x8xbf16>
    %c0_13 = arith.constant 0 : index
    %c41 = arith.constant 41 : index
    %17 = vector.load %arg5[%c0_13, %c41] : memref<4x110xbf16, #tpu.memory_space<vmem>>, vector<4x8xbf16>
    tpu.vector_store %arg5[%c0_13, %c41], %16 {strides = array<i32>} : memref<4x110xbf16, #tpu.memory_space<vmem>>, vector<4x8xbf16>,
    %c0_14 = arith.constant 0 : index
    %c0_15 = arith.constant 0 : index
    %c32 = arith.constant 32 : index
    %18 = vector.load %arg1[%c0_14, %c0_15, %c32] : memref<1x4x64xf32, #tpu.memory_space<vmem>>, vector<1x4x8xf32>
    %19 = vector.shape_cast %18 : vector<1x4x8xf32> to vector<4x8xf32>
    %20 = arith.truncf %19 : vector<4x8xf32> to vector<4x8xbf16>
    %c0_16 = arith.constant 0 : index
    %c51 = arith.constant 51 : index
    %21 = vector.load %arg5[%c0_16, %c51] : memref<4x110xbf16, #tpu.memory_space<vmem>>, vector<4x8xbf16>
    tpu.vector_store %arg5[%c0_16, %c51], %20 {strides = array<i32>} : memref<4x110xbf16, #tpu.memory_space<vmem>>, vector<4x8xbf16>,
    %c0_17 = arith.constant 0 : index
    %c0_18 = arith.constant 0 : index
    %c40 = arith.constant 40 : index
    %22 = vector.load %arg1[%c0_17, %c0_18, %c40] : memref<1x4x64xf32, #tpu.memory_space<vmem>>, vector<1x4x8xf32>
    %23 = vector.shape_cast %22 : vector<1x4x8xf32> to vector<4x8xf32>
    %24 = arith.truncf %23 : vector<4x8xf32> to vector<4x8xbf16>
    %c0_19 = arith.constant 0 : index
    %c61 = arith.constant 61 : index
    %25 = vector.load %arg5[%c0_19, %c61] : memref<4x110xbf16, #tpu.memory_space<vmem>>, vector<4x8xbf16>
    tpu.vector_store %arg5[%c0_19, %c61], %24 {strides = array<i32>} : memref<4x110xbf16, #tpu.memory_space<vmem>>, vector<4x8xbf16>,
    %c0_20 = arith.constant 0 : index
    %c0_21 = arith.constant 0 : index
    %c48 = arith.constant 48 : index
    %26 = vector.load %arg1[%c0_20, %c0_21, %c48] : memref<1x4x64xf32, #tpu.memory_space<vmem>>, vector<1x4x8xf32>
    %27 = vector.shape_cast %26 : vector<1x4x8xf32> to vector<4x8xf32>
    %28 = arith.truncf %27 : vector<4x8xf32> to vector<4x8xbf16>
    %c0_22 = arith.constant 0 : index
    %c71 = arith.constant 71 : index
    %29 = vector.load %arg5[%c0_22, %c71] : memref<4x110xbf16, #tpu.memory_space<vmem>>, vector<4x8xbf16>
    tpu.vector_store %arg5[%c0_22, %c71], %28 {strides = array<i32>} : memref<4x110xbf16, #tpu.memory_space<vmem>>, vector<4x8xbf16>,
    %c0_23 = arith.constant 0 : index
    %c0_24 = arith.constant 0 : index
    %c56 = arith.constant 56 : index
    %30 = vector.load %arg1[%c0_23, %c0_24, %c56] : memref<1x4x64xf32, #tpu.memory_space<vmem>>, vector<1x4x8xf32>
    %31 = vector.shape_cast %30 : vector<1x4x8xf32> to vector<4x8xf32>
    %32 = arith.truncf %31 : vector<4x8xf32> to vector<4x8xbf16>
    %c0_25 = arith.constant 0 : index
    %c81 = arith.constant 81 : index
    %33 = vector.load %arg5[%c0_25, %c81] : memref<4x110xbf16, #tpu.memory_space<vmem>>, vector<4x8xbf16>
    tpu.vector_store %arg5[%c0_25, %c81], %32 {strides = array<i32>} : memref<4x110xbf16, #tpu.memory_space<vmem>>, vector<4x8xbf16>,
    %cst_26 = arith.constant 0.000000e+00 : bf16
    %34 = vector.broadcast %cst_26 : bf16 to vector<36x48xbf16>
    %c0_27 = arith.constant 0 : index
    %c80 = arith.constant 80 : index
    %35 = vector.load %arg6[%c0_27, %c80] : memref<36x128xbf16, #tpu.memory_space<vmem>>, vector<36x48xbf16>
    tpu.vector_store %arg6[%c0_27, %c80], %34 {strides = array<i32>} : memref<36x128xbf16, #tpu.memory_space<vmem>>, vector<36x48xbf16>,
    %c0_28 = arith.constant 0 : index
    %c0_29 = arith.constant 0 : index
    %36 = vector.load %arg5[%c0_28, %c0_29] : memref<4x110xbf16, #tpu.memory_space<vmem>>, vector<4x80xbf16>
    %c0_30 = arith.constant 0 : index
    %c0_31 = arith.constant 0 : index
    %37 = vector.load %arg6[%c0_30, %c0_31] : memref<36x128xbf16, #tpu.memory_space<vmem>>, vector<4x80xbf16>
    tpu.vector_store %arg6[%c0_30, %c0_31], %36 {strides = array<i32>} : memref<36x128xbf16, #tpu.memory_space<vmem>>, vector<4x80xbf16>,
    %c0_32 = arith.constant 0 : index
    %c1 = arith.constant 1 : index
    %38 = vector.load %arg5[%c0_32, %c1] : memref<4x110xbf16, #tpu.memory_space<vmem>>, vector<4x80xbf16>
    %c4 = arith.constant 4 : index
    %c0_33 = arith.constant 0 : index
    %39 = vector.load %arg6[%c4, %c0_33] : memref<36x128xbf16, #tpu.memory_space<vmem>>, vector<4x80xbf16>
    tpu.vector_store %arg6[%c4, %c0_33], %38 {strides = array<i32>} : memref<36x128xbf16, #tpu.memory_space<vmem>>, vector<4x80xbf16>,
    %c0_34 = arith.constant 0 : index
    %c2 = arith.constant 2 : index
    %40 = vector.load %arg5[%c0_34, %c2] : memref<4x110xbf16, #tpu.memory_space<vmem>>, vector<4x80xbf16>
    %c8_35 = arith.constant 8 : index
    %c0_36 = arith.constant 0 : index
    %41 = vector.load %arg6[%c8_35, %c0_36] : memref<36x128xbf16, #tpu.memory_space<vmem>>, vector<4x80xbf16>
    tpu.vector_store %arg6[%c8_35, %c0_36], %40 {strides = array<i32>} : memref<36x128xbf16, #tpu.memory_space<vmem>>, vector<4x80xbf16>,
    %c0_37 = arith.constant 0 : index
    %c10 = arith.constant 10 : index
    %42 = vector.load %arg5[%c0_37, %c10] : memref<4x110xbf16, #tpu.memory_space<vmem>>, vector<4x80xbf16>
    %c12 = arith.constant 12 : index
    %c0_38 = arith.constant 0 : index
    %43 = vector.load %arg6[%c12, %c0_38] : memref<36x128xbf16, #tpu.memory_space<vmem>>, vector<4x80xbf16>
    tpu.vector_store %arg6[%c12, %c0_38], %42 {strides = array<i32>} : memref<36x128xbf16, #tpu.memory_space<vmem>>, vector<4x80xbf16>,
    %c0_39 = arith.constant 0 : index
    %c11_40 = arith.constant 11 : index
    %44 = vector.load %arg5[%c0_39, %c11_40] : memref<4x110xbf16, #tpu.memory_space<vmem>>, vector<4x80xbf16>
    %c16_41 = arith.constant 16 : index
    %c0_42 = arith.constant 0 : index
    %45 = vector.load %arg6[%c16_41, %c0_42] : memref<36x128xbf16, #tpu.memory_space<vmem>>, vector<4x80xbf16>
    tpu.vector_store %arg6[%c16_41, %c0_42], %44 {strides = array<i32>} : memref<36x128xbf16, #tpu.memory_space<vmem>>, vector<4x80xbf16>,
    %c0_43 = arith.constant 0 : index
    %c12_44 = arith.constant 12 : index
    %46 = vector.load %arg5[%c0_43, %c12_44] : memref<4x110xbf16, #tpu.memory_space<vmem>>, vector<4x80xbf16>
    %c20 = arith.constant 20 : index
    %c0_45 = arith.constant 0 : index
    %47 = vector.load %arg6[%c20, %c0_45] : memref<36x128xbf16, #tpu.memory_space<vmem>>, vector<4x80xbf16>
    tpu.vector_store %arg6[%c20, %c0_45], %46 {strides = array<i32>} : memref<36x128xbf16, #tpu.memory_space<vmem>>, vector<4x80xbf16>,
    %c0_46 = arith.constant 0 : index
    %c20_47 = arith.constant 20 : index
    %48 = vector.load %arg5[%c0_46, %c20_47] : memref<4x110xbf16, #tpu.memory_space<vmem>>, vector<4x80xbf16>
    %c24_48 = arith.constant 24 : index
    %c0_49 = arith.constant 0 : index
    %49 = vector.load %arg6[%c24_48, %c0_49] : memref<36x128xbf16, #tpu.memory_space<vmem>>, vector<4x80xbf16>
    tpu.vector_store %arg6[%c24_48, %c0_49], %48 {strides = array<i32>} : memref<36x128xbf16, #tpu.memory_space<vmem>>, vector<4x80xbf16>,
    %c0_50 = arith.constant 0 : index
    %c21_51 = arith.constant 21 : index
    %50 = vector.load %arg5[%c0_50, %c21_51] : memref<4x110xbf16, #tpu.memory_space<vmem>>, vector<4x80xbf16>
    %c28 = arith.constant 28 : index
    %c0_52 = arith.constant 0 : index
    %51 = vector.load %arg6[%c28, %c0_52] : memref<36x128xbf16, #tpu.memory_space<vmem>>, vector<4x80xbf16>
    tpu.vector_store %arg6[%c28, %c0_52], %50 {strides = array<i32>} : memref<36x128xbf16, #tpu.memory_space<vmem>>, vector<4x80xbf16>,
    %c0_53 = arith.constant 0 : index
    %c22 = arith.constant 22 : index
    %52 = vector.load %arg5[%c0_53, %c22] : memref<4x110xbf16, #tpu.memory_space<vmem>>, vector<4x80xbf16>
    %c32_54 = arith.constant 32 : index
    %c0_55 = arith.constant 0 : index
    %53 = vector.load %arg6[%c32_54, %c0_55] : memref<36x128xbf16, #tpu.memory_space<vmem>>, vector<4x80xbf16>
    tpu.vector_store %arg6[%c32_54, %c0_55], %52 {strides = array<i32>} : memref<36x128xbf16, #tpu.memory_space<vmem>>, vector<4x80xbf16>,
    %c0_56 = arith.constant 0 : index
    %c0_57 = arith.constant 0 : index
    %54 = vector.load %arg2[%c0_56, %c0_57] : memref<32x36xbf16, #tpu.memory_space<vmem>>, vector<32x36xbf16>
    %c0_58 = arith.constant 0 : index
    %c0_59 = arith.constant 0 : index
    %55 = vector.load %arg6[%c0_58, %c0_59] : memref<36x128xbf16, #tpu.memory_space<vmem>>, vector<36x128xbf16>
    %cst_60 = arith.constant dense<0.000000e+00> : vector<32x128xf32>
    %56 = tpu.matmul %54, %55, %cst_60 {dimension_numbers = #tpu.dot_dimension_numbers<[1], [0], [0], [1], [0, 0, 1, 1], [], []>} : vector<32x36xbf16>, vector<36x128xbf16>, vector<32x128xf32> -> vector<32x128xf32>
    %c0_61 = arith.constant 0 : index
    %c0_62 = arith.constant 0 : index
    %57 = vector.load %arg3[%c0_61, %c0_62] : memref<32x1xf32, #tpu.memory_space<vmem>>, vector<32x1xf32>
    %58 = vector.broadcast %57 : vector<32x1xf32> to vector<32x128xf32>
    %59 = arith.addf %56, %58 : vector<32x128xf32>
    %c0_63 = arith.constant 0 : index
    %c0_64 = arith.constant 0 : index
    %c0_65 = arith.constant 0 : index
    %60 = vector.load %arg4[%c0_63, %c0_64, %c0_65] : memref<1x32x128xf32, #tpu.memory_space<vmem>>, vector<1x32x128xf32>
    %61 = vector.shape_cast %60 : vector<1x32x128xf32> to vector<32x128xf32>
    %62 = vector.shape_cast %59 : vector<32x128xf32> to vector<1x32x128xf32>
    tpu.vector_store %arg4[%c0_63, %c0_64, %c0_65], %62 {strides = array<i32>} : memref<1x32x128xf32, #tpu.memory_space<vmem>>, vector<1x32x128xf32>,
    return
  }
  func.func @transform_0(%arg0: i32) -> (i32, i32, i32) {
    %c0_i32 = arith.constant 0 : i32
    %c0_i32_0 = arith.constant 0 : i32
    %c0_i32_1 = arith.constant 0 : i32
    return %arg0, %c0_i32, %c0_i32_0 : i32, i32, i32
  }
  func.func @transform_1(%arg0: i32) -> (i32, i32) {
    %c0_i32 = arith.constant 0 : i32
    %c0_i32_0 = arith.constant 0 : i32
    %c0_i32_1 = arith.constant 0 : i32
    return %c0_i32, %c0_i32_0 : i32, i32
  }
  func.func @transform_2(%arg0: i32) -> (i32, i32) {
    %c0_i32 = arith.constant 0 : i32
    %c0_i32_0 = arith.constant 0 : i32
    %c0_i32_1 = arith.constant 0 : i32
    return %c0_i32, %c0_i32_0 : i32, i32
  }
  func.func @transform_3(%arg0: i32) -> (i32, i32, i32) {
    %c0_i32 = arith.constant 0 : i32
    %c0_i32_0 = arith.constant 0 : i32
    %c0_i32_1 = arith.constant 0 : i32
    return %arg0, %c0_i32, %c0_i32_0 : i32, i32, i32
  }
}

</mosaic_0001>

<llo_original>
// kernel: tpu_custom_call.1
$region0: #{tpu_custom_call.1}
  #allocation0 [shape = 'u32[]', space=smem, size = 0x4, offset = 0x4, fixed_abs, tag = 'smem constant byte address 0x4 - core index']
  #allocation1 [shape = 'u32[72,128]{1,0:T(1,128)}', space=vmem, size = 0x9000, scoped, tag = 'internal scratch']
  #allocation2 [shape = 'bf16[4,110]{1,0:T(4,128)(2,1)}', space=vmem, size = 0x400, scoped, tag = 'scratch operand']
  #allocation3 [shape = 'bf16[36,128]{1,0:T(8,128)(2,1)}', space=vmem, size = 0x2800, scoped, tag = 'scratch operand']
  %s0 = inlined_call_operand.vmem [shape: f32[2,4,64], index: 0, kind: input, shape index: {}]
  %s1 = inlined_call_operand.vmem [shape: bf16[32,36], index: 1, kind: input, shape index: {}]
  %s2 = inlined_call_operand.vmem [shape: f32[32,1], index: 2, kind: input, shape index: {}]
  %s3 = inlined_call_operand.hbm [shape: f32[2,32,128], index: 3, kind: output, shape index: {}]
  %s4 = sld [smem:[#allocation0]]
  $region45: #{tpu_custom_call.1} parent=0
    _
  %s6 = ssub.s32 1, %s4
  %s7 = scalar_select 0, %s6, %s4
  $region1: #{tpu_custom_call.1} parent=0
    #allocation4 [shape = 'u8[32768]{0}', space=vmem, size = 0x8000, scoped, tag = 'output window, operand 0']
    #allocation5 [shape = 's32[2]{0}', space=sflag, size = 0x8, scoped, tag = 'scoped memory for tpu_custom_call.1']
    %8 = vsyncpa [#allocation5], 0
    %s9 = scalar_lea.sflag [#allocation5], 1
    %10 = vsyncpa %s9, 0
    loop: start=0, step=1, limit=4
    $region2: #{tpu_custom_call.1} parent=1 // loop_pre_header
      _
    $region3: #{tpu_custom_call.1} parent=1 // loop_header
      %s12 = sphi 0, %s16
      %p13 = scmp.ge.s32.totalorder %s12, 4
      %s22 = sphi 0, %s24
      %s25 = sphi 0, %s22
      %s26 = sphi 0, %s25
      %s42 = sphi 0, %s26
      %s46 = sphi 0, %s46
      %s48 = sphi 0, %s46
      %s49 = sphi 0, %s48
      %s63 = sphi 0, %s49
      %s67 = sphi 0, %s67
      %s69 = sphi 0, %s67
      %s70 = sphi 0, %s69
      %s84 = sphi 0, %s70
      %s90 = sphi 0, %s92
      %s93 = sphi 0, %s90
      %s94 = sphi 0, %s93
      %s110 = sphi 0, %s94
    $region4: #{tpu_custom_call.1} parent=1 // loop_header_branch
      %15 = sbr.rel (%p13) target = $region8
    $region5: #{tpu_custom_call.1} parent=1 // loop_body
      %s17 = ssub.s32 %s12, 1
      %s18 = ssub.s32 %s12, 2
      %s19 = sadd.s32 %s12, 1
      %s20 = ssub.s32 %s12, %s19
      %p21 = scmp.eq.s32.totalorder %s20, 0
      %s23 = sadd.s32 %s22, 1
      %s24 = scalar_select %p21, %s22, %s23
      %p27 = pneg %p21
      %p28 = scmp.eq.s32.totalorder %s12, 1
      %p29 = por %p27, %p28
      %p30 = scmp.ne.s32.totalorder %s22, %s25
      %p31 = scmp.eq.s32.totalorder %s12, 0
      %p32 = por %p30, %p31
      %p33 = scmp.ne.s32.totalorder %s22, %s25
      %p34 = scmp.eq.s32.totalorder %s17, 1
      %p35 = por %p33, %p34
      %p36 = scmp.ne.s32.totalorder %s25, %s26
      %p37 = scmp.eq.s32.totalorder %s17, 0
      %p38 = por %p36, %p37
      %p39 = scmp.ne.s32.totalorder %s25, %s26
      %p40 = scmp.eq.s32.totalorder %s18, 1
      %p41 = por %p39, %p40
      %p43 = scmp.ne.s32.totalorder %s26, %s42
      %p44 = scmp.eq.s32.totalorder %s18, 0
      %p45 = por %p43, %p44
      %s47 = sadd.s32 %s46, 1
      %p50 = scmp.eq.s32.totalorder %s12, 1
      %p51 = scmp.ne.s32.totalorder %s46, %s48
      %p52 = scmp.eq.s32.totalorder %s12, 0
      %p53 = por %p51, %p52
      %p54 = scmp.ne.s32.totalorder %s46, %s48
      %p55 = scmp.eq.s32.totalorder %s17, 1
      %p56 = por %p54, %p55
      %p57 = scmp.ne.s32.totalorder %s48, %s49
      %p58 = scmp.eq.s32.totalorder %s17, 0
      %p59 = por %p57, %p58
      %p60 = scmp.ne.s32.totalorder %s48, %s49
      %p61 = scmp.eq.s32.totalorder %s18, 1
      %p62 = por %p60, %p61
      %p64 = scmp.ne.s32.totalorder %s49, %s63
      %p65 = scmp.eq.s32.totalorder %s18, 0
      %p66 = por %p64, %p65
      %s68 = sadd.s32 %s67, 1
      %p71 = scmp.eq.s32.totalorder %s12, 1
      %p72 = scmp.ne.s32.totalorder %s67, %s69
      %p73 = scmp.eq.s32.totalorder %s12, 0
      %p74 = por %p72, %p73
      %p75 = scmp.ne.s32.totalorder %s67, %s69
      %p76 = scmp.eq.s32.totalorder %s17, 1
      %p77 = por %p75, %p76
      %p78 = scmp.ne.s32.totalorder %s69, %s70
      %p79 = scmp.eq.s32.totalorder %s17, 0
      %p80 = por %p78, %p79
      %p81 = scmp.ne.s32.totalorder %s69, %s70
      %p82 = scmp.eq.s32.totalorder %s18, 1
      %p83 = por %p81, %p82
      %p85 = scmp.ne.s32.totalorder %s70, %s84
      %p86 = scmp.eq.s32.totalorder %s18, 0
      %p87 = por %p85, %p86
      %s88 = ssub.s32 %s12, %s19
      %p89 = scmp.eq.s32.totalorder %s88, 0
      %s91 = sadd.s32 %s90, 1
      %s92 = scalar_select %p89, %s90, %s91
      %p95 = pneg %p89
      %p96 = scmp.eq.s32.totalorder %s12, 1
      %p97 = por %p95, %p96
      %p98 = scmp.ne.s32.totalorder %s90, %s93
      %p99 = scmp.eq.s32.totalorder %s12, 0
      %p100 = por %p98, %p99
      %p101 = scmp.ne.s32.totalorder %s90, %s93
      %p102 = scmp.eq.s32.totalorder %s17, 1
      %p103 = por %p101, %p102
      %p104 = scmp.ne.s32.totalorder %s93, %s94
      %p105 = scmp.eq.s32.totalorder %s17, 0
      %p106 = por %p104, %p105
      %p107 = scmp.ne.s32.totalorder %s93, %s94
      %p108 = scmp.eq.s32.totalorder %s18, 1
      %p109 = por %p107, %p108
      %p111 = scmp.ne.s32.totalorder %s94, %s110
      %p112 = scmp.eq.s32.totalorder %s18, 0
      %p113 = por %p111, %p112
      %p114 = scmp.le.s32.totalorder 1, %s12
      %p115 = scmp.lt.s32.totalorder %s12, 3
      %p116 = pnand %p114, %p115
      %p117 = pneg %p116
      // Predicated region
      $region9: #{tpu_custom_call.1} parent=5 // pred_check
        _
      $region10: #{tpu_custom_call.1} parent=5 // pred_check_branch
        %119 = sbr.rel (%p116) target = $region12
      $region11: #{tpu_custom_call.1} parent=5 // pred_region
        %s120 = ssub.s32 %s12, 1
        // Predicated region
        $region13: #{tpu_custom_call.1} parent=11 // pred_check
          %p121 = pneg %p59
        $region14: #{tpu_custom_call.1} parent=11 // pred_check_branch
          %123 = sbr.rel (%p121) target = $region16
        $region15: #{tpu_custom_call.1} parent=11 // pred_region
          _
        $region16: #{tpu_custom_call.1} parent=11 // pred_fallthru
          _
        // Predicated region
        $region17: #{tpu_custom_call.1} parent=11 // pred_check
          %p124 = pneg %p80
        $region18: #{tpu_custom_call.1} parent=11 // pred_check_branch
          %126 = sbr.rel (%p124) target = $region20
        $region19: #{tpu_custom_call.1} parent=11 // pred_region
          _
        $region20: #{tpu_custom_call.1} parent=11 // pred_fallthru
          _
      $region12: #{tpu_custom_call.1} parent=5 // pred_fallthru
        _
      %p127 = scmp.lt.s32.totalorder %s12, 2
      // Predicated region
      $region21: #{tpu_custom_call.1} parent=5 // pred_check
        %p128 = pneg %p127
      $region22: #{tpu_custom_call.1} parent=5 // pred_check_branch
        %130 = sbr.rel (%p128) target = $region24
      $region23: #{tpu_custom_call.1} parent=5 // pred_region
        // Predicated region
        $region25: #{tpu_custom_call.1} parent=23 // pred_check
          %p131 = pneg %p32
        $region26: #{tpu_custom_call.1} parent=23 // pred_check_branch
          %133 = sbr.rel (%p131) target = $region28
        $region27: #{tpu_custom_call.1} parent=23 // pred_region
          %p134 = scmp.lt.s32.totalorder %s12, 1
          %s135 = scalar_select %p134, %s12, 1
          %s136 = smul.addr %s135, 4
          %s137 = scalar_lea.vmem %s0, %s136
        $region28: #{tpu_custom_call.1} parent=23 // pred_fallthru
          _
      $region24: #{tpu_custom_call.1} parent=5 // pred_fallthru
        _
      %p138 = scmp.le.s32.totalorder 1, %s12
      %p139 = scmp.lt.s32.totalorder %s12, 3
      %p140 = pnand %p138, %p139
      %p141 = pneg %p140
      // Predicated region
      $region29: #{tpu_custom_call.1} parent=5 // pred_check
        _
      $region30: #{tpu_custom_call.1} parent=5 // pred_check_branch
        %143 = sbr.rel (%p140) target = $region32
      $region31: #{tpu_custom_call.1} parent=5 // pred_region
        %s144 = ssub.s32 %s12, 1
        %p145 = scmp.lt.s32.totalorder %s17, 1
        %s146 = scalar_select %p145, %s17, 1
        %s147 = smul.addr %s146, 4
        %s148 = scalar_lea.vmem %s0, %s147
        %p149 = pneg %p38
        %p150 = pneg %p35
        %p151 = pneg %p59
        %p152 = pneg %p56
        %p153 = pneg %p80
        %p154 = pneg %p77
        %p155 = pneg %p106
        %p156 = pneg %p103
        %s157 = sand.u32 %s93, 1
        %s158 = scalar_lea.sflag [#allocation5], %s157
        %s159 = sand.u32 %s93, 1
        %s160 = smul.addr %s159, 32
        %s161 = scalar_lea.vmem [#allocation4], %s160
        %p162 = scmp.lt.s32.totalorder %s17, 1
        %s163 = scalar_select %p162, %s17, 1
        %s164 = smul.addr %s163, 4
        %s165 = scalar_lea.vmem %s0, %s164
        %vm167 = vcmask 893952
        %168 = vst.msk [vmem:[#allocation2] sm:$0x3] %vm167, 0
        %v169 = vld [vmem:[%s165] sm:$0xf]
        %v170 = vpack.c.bf16 %v169, %v169
        %v172 = vrot.slane %v170, 2
        %vm173 = vcmask 1041408
        %v176 = vsel %vm173, %v170, %v172
        %178 = vrot.lane.b32.xlu0 %v176, 11
        %v179 = vpop.permute.xlu0 %178
        %vm181 = vcmask 148568
        %182 = vst.msk [vmem:[#allocation2] sm:$0x3] %vm181, %v179
        %v183 = vld [vmem:[%s165] sm:$0xf]
        %v184 = vpack.c.bf16 %v183, %v183
        %v186 = vrot.slane %v184, 2
        %v189 = vsel %vm173, %v184, %v186
        %191 = vrot.lane.b32.xlu0 %v189, 13
        %v192 = vpop.permute.xlu0 %191
        %vm194 = vcmask 230568
        %195 = vst.msk [vmem:[#allocation2] sm:$0x3] %vm194, %v192
        %v196 = vld [vmem:[%s165] sm:$0xf]
        %v197 = vpack.c.bf16 %v196, %v196
        %v199 = vrot.slane %v197, 2
        %v202 = vsel %vm173, %v197, %v199
        %204 = vrot.lane.b32.xlu0 %v202, 15
        %v205 = vpop.permute.xlu0 %204
        %vm207 = vcmask 312568
        %208 = vst.msk [vmem:[#allocation2] sm:$0x3] %vm207, %v205
        %v209 = vld [vmem:[%s165] sm:$0xf]
        %v210 = vpack.c.bf16 %v209, %v209
        %v212 = vrot.slane %v210, 2
        %v215 = vsel %vm173, %v210, %v212
        %217 = vrot.lane.b32.xlu0 %v215, 17
        %v218 = vpop.permute.xlu0 %217
        %vm220 = vcmask 394568
        %221 = vst.msk [vmem:[#allocation2] sm:$0x3] %vm220, %v218
        %v222 = vld [vmem:[%s165] sm:$0xf]
        %v223 = vpack.c.bf16 %v222, %v222
        %v225 = vrot.slane %v223, 2
        %v228 = vsel %vm173, %v223, %v225
        %230 = vrot.lane.b32.xlu0 %v228, 19
        %v231 = vpop.permute.xlu0 %230
        %vm233 = vcmask 476568
        %234 = vst.msk [vmem:[#allocation2] sm:$0x3] %vm233, %v231
        %v235 = vld [vmem:[%s165] sm:$0xf]
        %v236 = vpack.c.bf16 %v235, %v235
        %v238 = vrot.slane %v236, 2
        %v241 = vsel %vm173, %v236, %v238
        %243 = vrot.lane.b32.xlu0 %v241, 21
        %v244 = vpop.permute.xlu0 %243
        %vm246 = vcmask 558568
        %247 = vst.msk [vmem:[#allocation2] sm:$0x3] %vm246, %v244
        %v248 = vld [vmem:[%s165] sm:$0xf]
        %v249 = vpack.c.bf16 %v248, %v248
        %v251 = vrot.slane %v249, 2
        %v254 = vsel %vm173, %v249, %v251
        %256 = vrot.lane.b32.xlu0 %v254, 23
        %v257 = vpop.permute.xlu0 %256
        %vm259 = vcmask 640568
        %260 = vst.msk [vmem:[#allocation2] sm:$0x3] %vm259, %v257
        %v261 = vld [vmem:[%s165] sm:$0xf]
        %v262 = vpack.c.bf16 %v261, %v261
        %v264 = vrot.slane %v262, 2
        %v267 = vsel %vm173, %v262, %v264
        %269 = vrot.lane.b32.xlu0 %v267, 25
        %v270 = vpop.permute.xlu0 %269
        %vm272 = vcmask 722568
        %273 = vst.msk [vmem:[#allocation2] sm:$0x3] %vm272, %v270
        %vm274 = vcmask 1044096
        %275 = vst.msk [vmem:[#allocation3] sm:$0xf] %vm274, 0
        %276 = vst.msk [vmem:[#allocation3 + $0x4] sm:$0xf] %vm274, 0
        %277 = vst.msk [vmem:[#allocation3 + $0x8] sm:$0xf] %vm274, 0
        %278 = vst.msk [vmem:[#allocation3 + $0xc] sm:$0xf] %vm274, 0
        %vm279 = vcmask 1042048
        %280 = vst.msk [vmem:[#allocation3 + $0x10] sm:$0x3] %vm279, 0
        %v281 = vld [vmem:[#allocation2] sm:$0x3]
        %vm282 = vcmask 648192
        %283 = vst.msk [vmem:[#allocation3] sm:$0x3] %vm282, %v281
        %v284 = vld [vmem:[#allocation2] sm:$0x3]
        %s286 = scalar_lea.vmem [#allocation1], 1
        %287 = vst [vmem:[%s286] ss:$2 sm:$0xff] %v284
        %v288 = vld.sshfl [vmem:[#allocation1] sm:$0xff pattern:$0x75643120]
        %290 = vrot.lane.b32.xlu0 %v288, 127
        %v291 = vpop.permute.xlu0 %290
        %vm293 = vcmask 650242
        %294 = vst.msk [vmem:[#allocation3] sm:$0xc] %vm293, %v291
        %v295 = vld [vmem:[#allocation2] sm:$0x3]
        %297 = vst [vmem:[#allocation1] ss:$2 sm:$0xff] %v295
        %v298 = vld.sshfl [vmem:[#allocation1] sm:$0xff pattern:$0x75643120]
        %300 = vrot.lane.b32.xlu0 %v298, 126
        %v301 = vpop.permute.xlu0 %300
        %303 = vst.msk [vmem:[#allocation3 + $0x4] sm:$0x3] %vm282, %v301
        %v304 = vld [vmem:[#allocation2] sm:$0x3]
        %s306 = scalar_lea.vmem [#allocation1], 1
        %307 = vst [vmem:[%s306] ss:$2 sm:$0xff] %v304
        %v308 = vld.sshfl [vmem:[#allocation1] sm:$0xff pattern:$0x75643120]
        %310 = vrot.lane.b32.xlu0 %v308, 118
        %v311 = vpop.permute.xlu0 %310
        %313 = vst.msk [vmem:[#allocation3 + $0x4] sm:$0xc] %vm293, %v311
        %v314 = vld [vmem:[#allocation2] sm:$0x3]
        %316 = vst [vmem:[#allocation1] ss:$2 sm:$0xff] %v314
        %v317 = vld.sshfl [vmem:[#allocation1] sm:$0xff pattern:$0x75643120]
        %319 = vrot.lane.b32.xlu0 %v317, 117
        %v320 = vpop.permute.xlu0 %319
        %322 = vst.msk [vmem:[#allocation3 + $0x8] sm:$0x3] %vm282, %v320
        %v323 = vld [vmem:[#allocation2] sm:$0x3]
        %s325 = scalar_lea.vmem [#allocation1], 1
        %326 = vst [vmem:[%s325] ss:$2 sm:$0xff] %v323
        %v327 = vld.sshfl [vmem:[#allocation1] sm:$0xff pattern:$0x75643120]
        %329 = vrot.lane.b32.xlu0 %v327, 116
        %v330 = vpop.permute.xlu0 %329
        %332 = vst.msk [vmem:[#allocation3 + $0x8] sm:$0xc] %vm293, %v330
        %v333 = vld [vmem:[#allocation2] sm:$0x3]
        %335 = vst [vmem:[#allocation1] ss:$2 sm:$0xff] %v333
        %v336 = vld.sshfl [vmem:[#allocation1] sm:$0xff pattern:$0x75643120]
        %338 = vrot.lane.b32.xlu0 %v336, 108
        %v339 = vpop.permute.xlu0 %338
        %341 = vst.msk [vmem:[#allocation3 + $0xc] sm:$0x3] %vm282, %v339
        %v342 = vld [vmem:[#allocation2] sm:$0x3]
        %s344 = scalar_lea.vmem [#allocation1], 1
        %345 = vst [vmem:[%s344] ss:$2 sm:$0xff] %v342
        %v346 = vld.sshfl [vmem:[#allocation1] sm:$0xff pattern:$0x75643120]
        %348 = vrot.lane.b32.xlu0 %v346, 107
        %v349 = vpop.permute.xlu0 %348
        %351 = vst.msk [vmem:[#allocation3 + $0xc] sm:$0xc] %vm293, %v349
        %v352 = vld [vmem:[#allocation2] sm:$0x3]
        %354 = vst [vmem:[#allocation1] ss:$2 sm:$0xff] %v352
        %v355 = vld.sshfl [vmem:[#allocation1] sm:$0xff pattern:$0x75643120]
        %357 = vrot.lane.b32.xlu0 %v355, 106
        %v358 = vpop.permute.xlu0 %357
        %360 = vst.msk [vmem:[#allocation3 + $0x10] sm:$0x3] %vm282, %v358
        %v361 = vld [vmem:[%s1] sm:$0xf]
        %v362 = vld [vmem:[%s1 + $0x4] sm:$0xf]
        %v363 = vld [vmem:[%s1 + $0x8] sm:$0xf]
        %v364 = vld [vmem:[%s1 + $0xc] sm:$0xf]
        %v365 = vld [vmem:[#allocation3] sm:$0xf]
        %v366 = vld [vmem:[#allocation3 + $0x4] sm:$0xf]
        %v367 = vld [vmem:[#allocation3 + $0x8] sm:$0xf]
        %v368 = vld [vmem:[#allocation3 + $0xc] sm:$0xf]
        %v369 = vld [vmem:[#allocation3 + $0x10] sm:$0x3]
        %v370 = vld [vmem:[%s2] sm:$0xff]
        %v371 = vld [vmem:[%s2 + $0x8] sm:$0xff]
        %v372 = vld [vmem:[%s2 + $0x10] sm:$0xff]
        %v373 = vld [vmem:[%s2 + $0x18] sm:$0xff]
        %375 = vset.pattern.permute.xlu0 0
        %376 = vperm.xlu0 %375, %v370
        %v377 = vpop.permute.xlu0 %376
        %380 = vset.pattern.permute.xlu0 0
        %381 = vperm.xlu0 %380, %v371
        %v382 = vpop.permute.xlu0 %381
        %385 = vset.pattern.permute.xlu0 0
        %386 = vperm.xlu0 %385, %v372
        %v387 = vpop.permute.xlu0 %386
        %390 = vset.pattern.permute.xlu0 0
        %391 = vperm.xlu0 %390, %v373
        %v392 = vpop.permute.xlu0 %391
        %v398 = vunpack.c.l.b16 %v361
        %v399 = vunpack.c.l.b16 %v362
        %v400 = vunpack.c.l.b16 %v363
        %v401 = vunpack.c.l.b16 %v364
        %v402 = vpack.c.b16 %v399, %v398
        %v403 = vpack.c.b16 %v401, %v400
        %v409 = vunpack.c.l.b16 %v365
        %v410 = vunpack.c.l.b16 %v366
        %v411 = vunpack.c.l.b16 %v367
        %v412 = vunpack.c.l.b16 %v368
        %v413 = vunpack.c.l.b16 %v369
        %v414 = vpack.c.b16 %v410, %v409
        %v415 = vpack.c.b16 %v412, %v411
        %v416 = vpack.c.b16 %v413, %v413
        %vm419 = vcmask 293888
        %v421 = vsel %vm419, %v402, 0
        %v424 = vsel %vm419, %v403, 0
        %v427 = vsel %vm173, %v416, 0
        %429 = vmatpush.bf16.msra.mxu0 0
        %430 = vmatpush.bf16.msra.mxu0 0
        %431 = vmatpush.bf16.msra.mxu0 0
        %432 = vmatpush.bf16.msra.mxu0 0
        %433 = vmatpush.bf16.msra.mxu0 0
        %434 = vmatpush.bf16.msra.mxu0 %v427
        %435 = vmatpush.bf16.msra.mxu0 %v415
        %436 = vmatpush.bf16.msra.mxu0 %v414
        %437 = vmatmul.bf16.gmra.mxu0 %v421
        %v438 = vpop.f32.mrf.mxu0
        %v439 = vadd.f32 %v377, %v438
        %v440 = vpop.f32.mrf.mxu0
        %v441 = vadd.f32 %v382, %v440
        %442 = vmatmul.bf16.gmra.mxu0 %v424
        %v443 = vpop.f32.mrf.mxu0
        %v444 = vadd.f32 %v387, %v443
        %v445 = vpop.f32.mrf.mxu0
        %v446 = vadd.f32 %v392, %v445
        %447 = vdwg.mxu0
        %448 = vst [vmem:[%s161] sm:$0xff] %v439
        %449 = vst [vmem:[%s161 + $0x8] sm:$0xff] %v441
        %450 = vst [vmem:[%s161 + $0x10] sm:$0xff] %v444
        %451 = vst [vmem:[%s161 + $0x18] sm:$0xff] %v446
        %s452 = sand.u32 %s93, 1
        %s453 = scalar_lea.sflag [#allocation5], %s452
        %s454 = sand.u32 %s93, 1
        %s455 = smul.addr %s454, 32
        %s456 = scalar_lea.vmem [#allocation4], %s455
        // Predicated region
        $region33: #{tpu_custom_call.1} parent=31 // pred_check
          %p457 = pneg %p103
        $region34: #{tpu_custom_call.1} parent=31 // pred_check_branch
          %459 = sbr.rel (%p457) target = $region36
        $region35: #{tpu_custom_call.1} parent=31 // pred_region
          %461 = vsyncadd %s453, 0
          %s462 = smul.addr %s17, 4
          %s463 = smul.addr %s462, 8
          %s464 = scalar_lea.hbm %s3, %s463
          %s465 = sshll.u32 %s456, 4
          %s466 = int_to_ptr.vmem [resolvable:$true] %s465
          %s467 = sshll.u32 %s464, 4
          %s468 = int_to_ptr.hbm [resolvable:$true] %s467
          %473 = dma.vmem_to_hbm [thread:$0]  %s466, 512, %s468, %s453, 128, 128, 8
        $region36: #{tpu_custom_call.1} parent=31 // pred_fallthru
          _
      $region32: #{tpu_custom_call.1} parent=5 // pred_fallthru
        _
      %p474 = scmp.le.s32.totalorder 2, %s12
      // Predicated region
      $region37: #{tpu_custom_call.1} parent=5 // pred_check
        %p475 = pneg %p474
      $region38: #{tpu_custom_call.1} parent=5 // pred_check_branch
        %477 = sbr.rel (%p475) target = $region40
      $region39: #{tpu_custom_call.1} parent=5 // pred_region
        %s478 = ssub.s32 %s12, 2
        // Predicated region
        $region41: #{tpu_custom_call.1} parent=39 // pred_check
          %p479 = pneg %p109
        $region42: #{tpu_custom_call.1} parent=39 // pred_check_branch
          %481 = sbr.rel (%p479) target = $region44
        $region43: #{tpu_custom_call.1} parent=39 // pred_region
          %s482 = sand.u32 %s94, 1
          %s483 = scalar_lea.sflag [#allocation5], %s482
          %s484 = sand.u32 %s94, 1
          %s485 = smul.addr %s484, 32
          %s486 = scalar_lea.vmem [#allocation4], %s485
          %488 = dma.done %s483, 512
        $region44: #{tpu_custom_call.1} parent=39 // pred_fallthru
          _
      $region40: #{tpu_custom_call.1} parent=5 // pred_fallthru
        _
    $region6: #{tpu_custom_call.1} parent=1 // loop_footer
      %s16 = sadd.s32 1, %s12
    $region7: #{tpu_custom_call.1} parent=1 // loop_footer_branch
      %11 = sbr.rel target = $region3
    $region8: #{tpu_custom_call.1} parent=1 // loop_exit
      _
    %489 = vsyncpa [#allocation5], 1
    %s490 = scalar_lea.sflag [#allocation5], 1
    %491 = vsyncpa %s490, 1

</llo_original>
